<compile_context>
chip_gen: v7x
topology: tpu7x:2x2x1
jax: 0.10.0
libtpu: 0.0.40
codegen_flags: <defaults>
</compile_context>

<pallas_src>
import functools

import numpy as np
import jax
import jax.numpy as jnp
from jax.experimental import pallas as pl
from jax.experimental.pallas import tpu as pltpu


def _round_up(n, m):
    return ((n + m - 1) // m) * m


def mlp_kernel(x_ref, w_ref, b_ref, o_ref):
    # x_ref: [TB, 768]  (VMEM, batch tile; bf16 or f32)
    # w_ref: [1, 768]   (VMEM, folded weight row, grid-resident, f32)
    # b_ref: [1]        (SMEM, folded bias scalar, f32)
    # o_ref: [TB, 1]    (VMEM, f32)
    x = x_ref[...].astype(jnp.float32)            # upcast (no-op for f32 input)
    w = w_ref[...]                                # [1, D] broadcasts over batch
    # N=1 output column: VPU elementwise mul + cross-lane (XLU) reduction,
    # accumulated in f32.
    y = jnp.sum(x * w, axis=-1, keepdims=True)    # [TB, 1]
    o_ref[...] = y + b_ref[0]


def fold_affine_chain(params):
    """Fold the affine layer chain (W[i]: [in,out], b[i]: [1,out]) into one.

    Runs once on the host in float64, then casts to the f32 [1, 768] weight
    row + [1] bias scalar the kernel consumes. Call this OUTSIDE the jitted
    forward so it is not re-executed / re-dispatched per call.
    """
    w_eff = np.asarray(params[0][0], dtype=np.float64)
    b_eff = np.asarray(params[0][1], dtype=np.float64)
    for w, b in params[1:]:
        w64 = np.asarray(w, dtype=np.float64)
        b64 = np.asarray(b, dtype=np.float64)
        b_eff = b_eff @ w64 + b64
        w_eff = w_eff @ w64
    w_row = jnp.asarray(w_eff.T, dtype=jnp.float32)               # [1, 768]
    b_scalar = jnp.asarray(b_eff.reshape(-1), dtype=jnp.float32)  # [1]
    return w_row, b_scalar


@functools.partial(jax.jit, static_argnames=("tile_b",))
def mlp_forward(x, w_row, b_scalar, tile_b=2048):
    """x: [B, 768] float32 or bfloat16. w_row: [1, 768] f32. b_scalar: [1] f32."""
    B, D = x.shape

    # Batch tile: as large as possible (amortize per-grid-step overhead), but
    # (a) capped near B/4 so the grid has several steps when B allows (v7x
    # megacore sharding + pipeline depth) and (b) never far beyond B itself.
    # 16-row quantum covers both f32 (8) and bf16 (16) sublane packing.
    # No padding of x: the ragged last block is masked on writeback.
    tb = min(tile_b, _round_up(pl.cdiv(B, 4), 16), _round_up(B, 16))

    out = pl.pallas_call(
        mlp_kernel,
        out_shape=jax.ShapeDtypeStruct((B, 1), jnp.float32),
        grid=(pl.cdiv(B, tb),),
        in_specs=[
            pl.BlockSpec((tb, D), lambda i: (i, 0)),            # x: batch-tiled stream
            pl.BlockSpec((1, D), lambda i: (0, 0)),             # folded weight, resident
            pl.BlockSpec(memory_space=pltpu.MemorySpace.SMEM),  # folded bias scalar
        ],
        out_specs=pl.BlockSpec((tb, 1), lambda i: (i, 0)),
        compiler_params=pltpu.CompilerParams(
            dimension_semantics=("parallel",),
        ),
    )(x, w_row, b_scalar)
    return out


def init_params(key):
    """Deterministic init mimicking nn.Linear's uniform(-1/sqrt(fan_in), ...)."""
    dims = [768, 1024, 128, 64, 16, 1]
    params = []
    for i in range(len(dims) - 1):
        fan_in, fan_out = dims[i], dims[i + 1]
        key, kw, kb = jax.random.split(key, 3)
        bound = 1.0 / jnp.sqrt(fan_in)
        w = jax.random.uniform(kw, (fan_in, fan_out), jnp.float32, -bound, bound)
        b = jax.random.uniform(kb, (1, fan_out), jnp.float32, -bound, bound)
        params.append((w, b))
    return params


def reference_forward(x, params):
    h = x
    for w, b in params:
        h = jnp.dot(h, w, precision=jax.lax.Precision.HIGHEST) + b
    return h


if __name__ == "__main__":
    key = jax.random.PRNGKey(0)
    key, kx1, kx2 = jax.random.split(key, 3)
    params = init_params(key)

    # Fold once, on the host, outside the jitted forward.
    w_row, b_scalar = fold_affine_chain(params)

    # Check 1: small f32 batch (single ragged block; exact-f32 path).
    B = 8
    x = jax.random.normal(kx1, (B, 768), jnp.float32)
    out = jax.block_until_ready(mlp_forward(x, w_row, b_scalar))
    ref = reference_forward(x, params)
    assert out.shape == (B, 1), out.shape
    assert jnp.allclose(out, ref, atol=1e-4, rtol=1e-4), (
        f"max abs diff {jnp.max(jnp.abs(out - ref))}"
    )

    # Check 2: multi-tile ragged batch (4 grid steps, masked last block) with
    # bf16 input -- the halved-HBM-traffic path. Reference uses the same
    # bf16-rounded x upcast to f32, so the comparison isolates kernel error.
    B2 = 1037
    x2 = jax.random.normal(kx2, (B2, 768), jnp.float32).astype(jnp.bfloat16)
    out2 = jax.block_until_ready(mlp_forward(x2, w_row, b_scalar))
    ref2 = reference_forward(x2.astype(jnp.float32), params)
    assert out2.shape == (B2, 1), out2.shape
    assert jnp.allclose(out2, ref2, atol=5e-4, rtol=5e-4), (
        f"max abs diff {jnp.max(jnp.abs(out2 - ref2))}"
    )

    print("KERNEL_OK")
</pallas_src>

<mosaic_0001>
module attributes {stable_mosaic.version = 11 : i64} {
  func.func @mlp_kernel(%arg0: i32, %arg1: memref<16x768xf32, #tpu.memory_space<vmem>>, %arg2: memref<1x768xf32, #tpu.memory_space<vmem>>, %arg3: memref<1xf32, #tpu.memory_space<smem>>, %arg4: memref<16x1xf32, #tpu.memory_space<vmem>>) attributes {dimension_semantics = [#tpu.dimension_semantics<parallel>], iteration_bounds = array<i64: 1>, scalar_prefetch = 0 : i64, scratch_operands = 0 : i64, tpu.core_type = #tpu.core_type<tc>, window_params = [{transform_indices = @transform_0, window_bounds = array<i64: 16, 768>}, {pipeline_mode = #tpu.pipeline_mode<synchronous>, transform_indices = @transform_1, window_bounds = array<i64: 1, 768>}, {transform_indices = @transform_2, window_bounds = array<i64: 1>}, {transform_indices = @transform_3, window_bounds = array<i64: 16, 1>}]} {
    %c0 = arith.constant 0 : index
    %c0_0 = arith.constant 0 : index
    %0 = vector.load %arg1[%c0, %c0_0] : memref<16x768xf32, #tpu.memory_space<vmem>>, vector<16x768xf32>
    %c0_1 = arith.constant 0 : index
    %c0_2 = arith.constant 0 : index
    %1 = vector.load %arg2[%c0_1, %c0_2] : memref<1x768xf32, #tpu.memory_space<vmem>>, vector<1x768xf32>
    %2 = vector.broadcast %1 : vector<1x768xf32> to vector<16x768xf32>
    %3 = arith.mulf %0, %2 : vector<16x768xf32>
    %cst = arith.constant dense<0.000000e+00> : vector<16xf32>
    %4 = vector.multi_reduction <add>, %3, %cst [1] : vector<16x768xf32> to vector<16xf32>
    %5 = vector.shape_cast %4 : vector<16xf32> to vector<16x1xf32>
    %c0_3 = arith.constant 0 : index
    %6 = memref.load %arg3[%c0_3] : memref<1xf32, #tpu.memory_space<smem>>
    %7 = vector.broadcast %6 : f32 to vector<16x1xf32>
    %8 = arith.addf %5, %7 : vector<16x1xf32>
    %c0_4 = arith.constant 0 : index
    %c0_5 = arith.constant 0 : index
    %9 = vector.load %arg4[%c0_4, %c0_5] : memref<16x1xf32, #tpu.memory_space<vmem>>, vector<16x1xf32>
    tpu.vector_store %arg4[%c0_4, %c0_5], %8 {strides = array<i32>} : memref<16x1xf32, #tpu.memory_space<vmem>>, vector<16x1xf32>,
    return
  }
  func.func @transform_0(%arg0: i32) -> (i32, i32) {
    %c0_i32 = arith.constant 0 : i32
    %c0_i32_0 = arith.constant 0 : i32
    return %arg0, %c0_i32 : i32, i32
  }
  func.func @transform_1(%arg0: i32) -> (i32, i32) {
    %c0_i32 = arith.constant 0 : i32
    %c0_i32_0 = arith.constant 0 : i32
    %c0_i32_1 = arith.constant 0 : i32
    return %c0_i32, %c0_i32_0 : i32, i32
  }
  func.func @transform_2(%arg0: i32) -> i32 {
    %c0_i32 = arith.constant 0 : i32
    %c0_i32_0 = arith.constant 0 : i32
    return %c0_i32 : i32
  }
  func.func @transform_3(%arg0: i32) -> (i32, i32) {
    %c0_i32 = arith.constant 0 : i32
    %c0_i32_0 = arith.constant 0 : i32
    return %arg0, %c0_i32 : i32, i32
  }
}

</mosaic_0001>

<llo_original>
// kernel: mlp_forward.1
$region0: #{mlp_forward.1}
  #allocation0 [shape = 'u32[]', space=smem, size = 0x4, offset = 0x4, fixed_abs, tag = 'smem constant byte address 0x4 - core index']
  #allocation1 [shape = 'u32[144,128]{1,0:T(1,128)}', space=vmem, size = 0x12000, scoped, tag = 'internal scratch']
  #allocation2 [shape = 'f32[1]{0:T(128)S(6)}', space=smem, size = 0x200, scoped, tag = 'scoped memory for mlp_forward.1']
  %s0 = inlined_call_operand.hbm [shape: f32[8,768], index: 0, kind: input, shape index: {}]
  %s1 = inlined_call_operand.vmem [shape: f32[1,768], index: 1, kind: input, shape index: {}]
  %s2 = inlined_call_operand.<no memory space> [shape: f32[1], index: 2, kind: input, shape index: {}]
  %s3 = inlined_call_operand.vmem [shape: f32[8,1], index: 3, kind: output, shape index: {}]
  %s4 = sld [smem:[#allocation0]]
  $region60: #{mlp_forward.1} parent=0
    _
  %s6 = ssub.s32 1, %s4
  %s7 = scalar_select 0, %s6, %s4
  %8 = sst [smem:[#allocation2]] %s2
  $region1: #{mlp_forward.1} parent=0
    #allocation3 [shape = 'u8[49152]{0}', space=vmem, size = 0xc000, scoped, tag = 'input window, operand 0, single buffered']
    #allocation4 [shape = 's32[1]{0}', space=sflag, size = 0x4, scoped, tag = 'scoped memory for mlp_forward.1']
    #allocation5 [shape = 'u8[8192]{0}', space=vmem, size = 0x2000, scoped, tag = 'output window, operand 0, single buffered']
    %9 = vsyncpa [#allocation4], 0
    // Predicated region
    $region2: #{mlp_forward.1} parent=1 // pred_check
      _
    $region3: #{mlp_forward.1} parent=1 // pred_check_branch
      %11 = sbr.rel (0) target = $region5
    $region4: #{mlp_forward.1} parent=1 // pred_region
      %s13 = ssub.s32 1536, 768
      %14 = vsyncadd [#allocation4], %s13
      %s15 = sshll.u32 [#allocation3], 4
      %s16 = int_to_ptr.vmem [resolvable:$true] %s15
      %21 = dma.hbm_to_vmem [thread:$0]  %s0, 768, %s16, [#allocation4], 768, 768, 48
    $region5: #{mlp_forward.1} parent=1 // pred_fallthru
      _
    // Predicated region
    $region6: #{mlp_forward.1} parent=1 // pred_check
      _
    $region7: #{mlp_forward.1} parent=1 // pred_check_branch
      %23 = sbr.rel (0) target = $region9
    $region8: #{mlp_forward.1} parent=1 // pred_region
      _
    $region9: #{mlp_forward.1} parent=1 // pred_fallthru
      _
    // Predicated region
    $region10: #{mlp_forward.1} parent=1 // pred_check
      _
    $region11: #{mlp_forward.1} parent=1 // pred_check_branch
      %25 = sbr.rel (0) target = $region13
    $region12: #{mlp_forward.1} parent=1 // pred_region
      _
    $region13: #{mlp_forward.1} parent=1 // pred_fallthru
      _
    // Predicated region
    $region14: #{mlp_forward.1} parent=1 // pred_check
      _
    $region15: #{mlp_forward.1} parent=1 // pred_check_branch
      %27 = sbr.rel (0) target = $region17
    $region16: #{mlp_forward.1} parent=1 // pred_region
      %28 = dma.done [#allocation4], 1536
    $region17: #{mlp_forward.1} parent=1 // pred_fallthru
      _
    %v29 = vld [vmem:[#allocation3] sm:$0xff]
    %v30 = vld [vmem:[#allocation3 + $0x8] sm:$0xff]
    %v31 = vld [vmem:[#allocation3 + $0x10] sm:$0xff]
    %v32 = vld [vmem:[#allocation3 + $0x18] sm:$0xff]
    %v33 = vld [vmem:[#allocation3 + $0x20] sm:$0xff]
    %v34 = vld [vmem:[#allocation3 + $0x28] sm:$0xff]
    %v35 = vld [vmem:[#allocation3 + $0x30] sm:$0xff]
    %v36 = vld [vmem:[#allocation3 + $0x38] sm:$0xff]
    %v37 = vld [vmem:[#allocation3 + $0x40] sm:$0xff]
    %v38 = vld [vmem:[#allocation3 + $0x48] sm:$0xff]
    %v39 = vld [vmem:[#allocation3 + $0x50] sm:$0xff]
    %v40 = vld [vmem:[#allocation3 + $0x58] sm:$0xff]
    %v41 = vld [vmem:[%s1] sm:$0x3f]
    %v43 = vlaneseq
    %v44 = vshrl.u32 %v43, 7
    %v45 = vsub.s32 0, %v44
    %v46 = vrot.slane %v41, %v45
    %v47 = vlaneseq
    %v48 = vshrl.u32 %v47, 7
    %v49 = vsub.s32 1, %v48
    %v50 = vrot.slane %v41, %v49
    %v51 = vlaneseq
    %v52 = vshrl.u32 %v51, 7
    %v53 = vsub.s32 2, %v52
    %v54 = vrot.slane %v41, %v53
    %v55 = vlaneseq
    %v56 = vshrl.u32 %v55, 7
    %v57 = vsub.s32 3, %v56
    %v58 = vrot.slane %v41, %v57
    %v59 = vlaneseq
    %v60 = vshrl.u32 %v59, 7
    %v61 = vsub.s32 4, %v60
    %v62 = vrot.slane %v41, %v61
    %v63 = vlaneseq
    %v64 = vshrl.u32 %v63, 7
    %v65 = vsub.s32 5, %v64
    %v66 = vrot.slane %v41, %v65
    %v73 = vmul.f32 %v29, %v46
    %v74 = vmul.f32 %v30, %v50
    %v75 = vmul.f32 %v31, %v54
    %v76 = vmul.f32 %v32, %v58
    %v77 = vmul.f32 %v33, %v62
    %v78 = vmul.f32 %v34, %v66
    %v79 = vmul.f32 %v35, %v46
    %v80 = vmul.f32 %v36, %v50
    %v81 = vmul.f32 %v37, %v54
    %v82 = vmul.f32 %v38, %v58
    %v83 = vmul.f32 %v39, %v62
    %v84 = vmul.f32 %v40, %v66
    %v85 = vadd.f32 %v73, %v74
    %v86 = vadd.f32 %v85, %v75
    %v87 = vadd.f32 %v86, %v76
    %v88 = vadd.f32 %v87, %v77
    %v89 = vadd.f32 %v88, %v78
    %90 = vadd.xlane.f32.xlu0 %v89
    %v91 = vpop.xlane.xlu0 %90
    %v92 = vadd.f32 %v79, %v80
    %v93 = vadd.f32 %v92, %v81
    %v94 = vadd.f32 %v93, %v82
    %v95 = vadd.f32 %v94, %v83
    %v96 = vadd.f32 %v95, %v84
    %97 = vadd.xlane.f32.xlu0 %v96
    %v98 = vpop.xlane.xlu0 %97
    %s99 = sld [smem:[#allocation2]]
    %v100 = vstv %s99
    %v101 = vadd.f32 %v91, %v100
    %v102 = vadd.f32 %v98, %v100
    %vm103 = vcmask 7168
    %104 = vst.msk [vmem:[#allocation5] sm:$0xff] %vm103, %v101
    %105 = vst.msk [vmem:[#allocation5 + $0x8] sm:$0xff] %vm103, %v102
    // Predicated region
    $region18: #{mlp_forward.1} parent=1 // pred_check
      _
    $region19: #{mlp_forward.1} parent=1 // pred_check_branch
      %107 = sbr.rel (0) target = $region21
    $region20: #{mlp_forward.1} parent=1 // pred_region
      // Predicated region
      $region22: #{mlp_forward.1} parent=20 // pred_check
        _
      $region23: #{mlp_forward.1} parent=20 // pred_check_branch
        %109 = sbr.rel (0) target = $region25
      $region24: #{mlp_forward.1} parent=20 // pred_region
        // Predicated region
        $region26: #{mlp_forward.1} parent=24 // pred_check
          _
        $region27: #{mlp_forward.1} parent=24 // pred_check_branch
          %111 = sbr.rel (0) target = $region29
        $region28: #{mlp_forward.1} parent=24 // pred_region
          // Predicated region
          $region41: #{mlp_forward.1} parent=28 // pred_check
            _
          $region42: #{mlp_forward.1} parent=28 // pred_check_branch
            %126 = sbr.rel (0) target = $region44
          $region43: #{mlp_forward.1} parent=28 // pred_region
            loop: start=0, step=1, limit=1
            $region45: #{mlp_forward.1} parent=43 // loop_pre_header
              _
            $region46: #{mlp_forward.1} parent=43 // loop_header
              %s128 = sphi 0, %s132
              %p129 = scmp.ge.s32.totalorder %s128, 1
              %s133 = sphi [#allocation5], [#allocation5]
              %s134 = sphi %s3, %s3
            $region47: #{mlp_forward.1} parent=43 // loop_header_branch
              %131 = sbr.rel (%p129) target = $region51
            $region48: #{mlp_forward.1} parent=43 // loop_body
              %v135 = vld [vmem:[%s133] sm:$0xff]
              %136 = vst [vmem:[%s134] sm:$0xff] %v135
            $region49: #{mlp_forward.1} parent=43 // loop_footer
              %s132 = sadd.s32 1, %s128
            $region50: #{mlp_forward.1} parent=43 // loop_footer_branch
              %127 = sbr.rel target = $region46
            $region51: #{mlp_forward.1} parent=43 // loop_exit
              _
          $region44: #{mlp_forward.1} parent=28 // pred_fallthru
            _
          // Predicated region
          $region52: #{mlp_forward.1} parent=28 // pred_check
            _
          $region53: #{mlp_forward.1} parent=28 // pred_check_branch
            %138 = sbr.rel target = $region55
          $region54: #{mlp_forward.1} parent=28 // pred_region
            _
          $region55: #{mlp_forward.1} parent=28 // pred_fallthru
            _
        $region29: #{mlp_forward.1} parent=24 // pred_fallthru
          _
        // Predicated region
        $region30: #{mlp_forward.1} parent=24 // pred_check
          _
        $region31: #{mlp_forward.1} parent=24 // pred_check_branch
          %113 = sbr.rel target = $region33
        $region32: #{mlp_forward.1} parent=24 // pred_region
          loop: start=0, step=1, limit=1
          $region34: #{mlp_forward.1} parent=32 // loop_pre_header
            _
          $region35: #{mlp_forward.1} parent=32 // loop_header
            %s116 = sphi 0, %s120
            %p117 = scmp.ge.s32.totalorder %s116, 1
            %s121 = sphi [#allocation5], [#allocation5]
            %s122 = sphi %s3, %s3
          $region36: #{mlp_forward.1} parent=32 // loop_header_branch
            %119 = sbr.rel (%p117) target = $region40
          $region37: #{mlp_forward.1} parent=32 // loop_body
            %v123 = vld [vmem:[%s121] sm:$0xff]
            %124 = vst [vmem:[%s122] sm:$0xff] %v123
          $region38: #{mlp_forward.1} parent=32 // loop_footer
            %s120 = sadd.s32 1, %s116
          $region39: #{mlp_forward.1} parent=32 // loop_footer_branch
            %115 = sbr.rel target = $region35
          $region40: #{mlp_forward.1} parent=32 // loop_exit
            _
        $region33: #{mlp_forward.1} parent=24 // pred_fallthru
          _
      $region25: #{mlp_forward.1} parent=20 // pred_fallthru
        _
      %139 = vnop
    $region21: #{mlp_forward.1} parent=1 // pred_fallthru
      _
    // Predicated region
    $region56: #{mlp_forward.1} parent=1 // pred_check
      _
    $region57: #{mlp_forward.1} parent=1 // pred_check_branch
      %141 = sbr.rel (0) target = $region59
    $region58: #{mlp_forward.1} parent=1 // pred_region
      _
    $region59: #{mlp_forward.1} parent=1 // pred_fallthru
      _
    %142 = vsyncpa [#allocation4], 1

</llo_original>
